<compile_context>
chip_gen: v7x
topology: tpu7x:2x2x1
jax: 0.10.0
libtpu: 0.0.40
codegen_flags: <defaults>
</compile_context>

<pallas_src>
import jax
import jax.numpy as jnp
from jax.experimental import pallas as pl
from jax.experimental.pallas import tpu as pltpu


# ---------------------------------------------------------------------------
# Single fused, gridless Encoder kernel.
# ---------------------------------------------------------------------------
def encoder_forward(drug_sim, drug_feature, w_drug,
                    dis_sim, dis_feature, w_dis,
                    drug_disease_sim, w_fusion):
    """One fused gridless pallas_call for the whole Encoder forward.

    Shapes:
      drug_sim [Vd,Nd,Nd], drug_feature [Nd,H], w_drug [Vd,H,H]
      dis_sim  [Vs,Ns,Ns], dis_feature  [Ns,H], w_dis  [Vs,H,H]
      drug_disease_sim [M,M] (M=Nd+Ns), w_fusion [H,H]  ->  [M,H]
    """
    Vd, Nd, _ = drug_sim.shape
    Vs, Ns, _ = dis_sim.shape
    H = drug_feature.shape[1]
    M = drug_disease_sim.shape[0]
    assert M == Nd + Ns, "adjacency must be (drug_num + dis_num)^2"

    # Host-side operand packing (free layout ops in XLA): 8 DMAs -> 5.
    drug_sim_flat = drug_sim.reshape(Vd * Nd, Nd)                      # [Vd*Nd, Nd]
    dis_sim_flat = dis_sim.reshape(Vs * Ns, Ns)                        # [Vs*Ns, Ns]
    feat_all = jnp.concatenate((drug_feature, dis_feature), axis=0)    # [M, H]
    w_all = jnp.concatenate((w_drug, w_dis, w_fusion[None]), axis=0)   # [Vd+Vs+1, H, H]

    def kernel(drug_sim_ref, dis_sim_ref, feat_ref, w_ref, adj_ref, out_ref):
        feat = feat_ref[...]                                           # [M, H]

        def extraction(sim_flat, f, w_base, n_views, n):
            # One MXU op for all views: [V*N, N] @ [N, H] -> [V*N, H].
            sf = jnp.dot(sim_flat, f, preferred_element_type=jnp.float32)
            acc = None
            for v in range(n_views):                    # static unroll
                # Static, sublane-aligned row slice of sf (n = 16 here).
                h = jnp.dot(sf[v * n:(v + 1) * n], w_ref[w_base + v],
                            preferred_element_type=jnp.float32)
                h = jnp.maximum(h, 0.0)                 # relu per view
                acc = h if acc is None else acc + h
            return acc * jnp.float32(1.0 / n_views)     # mean via recip-mul

        drug = extraction(drug_sim_ref[...], feat[:Nd], 0, Vd, Nd)     # [Nd, H]
        dis = extraction(dis_sim_ref[...], feat[Nd:], Vd, Vs, Ns)      # [Ns, H]

        # Fusion without an in-kernel concat: split adj along its lane axis.
        adj = adj_ref[...]
        af = (jnp.dot(adj[:, :Nd], drug, preferred_element_type=jnp.float32) +
              jnp.dot(adj[:, Nd:], dis, preferred_element_type=jnp.float32))
        out = jnp.dot(af, w_ref[Vd + Vs], preferred_element_type=jnp.float32)
        out_ref[...] = jnp.maximum(out, 0.0)

    vmem = pl.BlockSpec(memory_space=pltpu.MemorySpace.VMEM)
    return pl.pallas_call(
        kernel,
        out_shape=jax.ShapeDtypeStruct((M, H), jnp.float32),
        in_specs=[vmem, vmem, vmem, vmem, vmem],
        out_specs=vmem,
    )(drug_sim_flat, dis_sim_flat, feat_all, w_all, drug_disease_sim)


# ---------------------------------------------------------------------------
# Encoder: parameter setup + split in plain JAX; forward is one fused kernel.
# ---------------------------------------------------------------------------
class EncoderPallas:
    def __init__(self, drug_num, dis_num, key):
        self.drug_num = drug_num
        self.dis_num = dis_num
        H = drug_num + dis_num
        k1, k2, k3 = jax.random.split(key, 3)
        scale = 1.0 / jnp.sqrt(jnp.float32(H))
        self.w_drug = jax.random.normal(k1, (4, H, H), jnp.float32) * scale
        self.w_dis = jax.random.normal(k2, (2, H, H), jnp.float32) * scale
        self.w_fusion = jax.random.normal(k3, (H, H), jnp.float32) * scale

    def __call__(self, drug_sim, drug_feature, dis_sim, dis_feature,
                 drug_disease_sim):
        output = encoder_forward(
            drug_sim, drug_feature, self.w_drug,
            dis_sim, dis_feature, self.w_dis,
            drug_disease_sim, self.w_fusion)
        return output[: self.drug_num, :], output[self.drug_num:, :]


if __name__ == "__main__":
    drug_num, dis_num = 16, 16
    H = drug_num + dis_num  # hidden_dim = drug_num + dis_num

    key = jax.random.PRNGKey(0)
    kp, k1, k2, k3, k4, k5 = jax.random.split(key, 6)

    drug_sim = jax.random.uniform(k1, (4, drug_num, drug_num), jnp.float32)
    drug_feature = jax.random.normal(k2, (drug_num, H), jnp.float32)
    dis_sim = jax.random.uniform(k3, (2, dis_num, dis_num), jnp.float32)
    dis_feature = jax.random.normal(k4, (dis_num, H), jnp.float32)
    drug_disease_sim = jax.random.uniform(
        k5, (drug_num + dis_num, drug_num + dis_num), jnp.float32)

    enc = EncoderPallas(drug_num, dis_num, kp)
    fwd = jax.jit(enc.__call__)
    drug_out, dis_out = fwd(drug_sim, drug_feature, dis_sim, dis_feature,
                            drug_disease_sim)
    jax.block_until_ready((drug_out, dis_out))

    # Pure-JAX reference check.
    def ref_extraction(sim, feat, w):
        h = jnp.maximum(jnp.einsum("vnm,mh->vnh", sim, feat) @ w, 0.0)
        return h.mean(axis=0)

    drug_r = ref_extraction(drug_sim, drug_feature, enc.w_drug)
    dis_r = ref_extraction(dis_sim, dis_feature, enc.w_dis)
    out_r = jnp.maximum(
        drug_disease_sim @ jnp.concatenate((drug_r, dis_r), 0) @ enc.w_fusion,
        0.0)
    assert jnp.allclose(drug_out, out_r[:drug_num], atol=1e-4, rtol=1e-4)
    assert jnp.allclose(dis_out, out_r[drug_num:], atol=1e-4, rtol=1e-4)
    assert drug_out.shape == (drug_num, H) and dis_out.shape == (dis_num, H)

    print("KERNEL_OK")
</pallas_src>

<mosaic_0001>
module attributes {stable_mosaic.version = 11 : i64} {
  func.func @kernel(%arg0: memref<64x16xf32, #tpu.memory_space<vmem>>, %arg1: memref<32x16xf32, #tpu.memory_space<vmem>>, %arg2: memref<32x32xf32, #tpu.memory_space<vmem>>, %arg3: memref<7x32x32xf32, #tpu.memory_space<vmem>>, %arg4: memref<32x32xf32, #tpu.memory_space<vmem>>, %arg5: memref<32x32xf32, #tpu.memory_space<vmem>>) attributes {dimension_semantics = [], scalar_prefetch = 0 : i64, scratch_operands = 0 : i64, tpu.core_type = #tpu.core_type<tc>} {
    %c0 = arith.constant 0 : index
    %c0_0 = arith.constant 0 : index
    %0 = vector.load %arg2[%c0, %c0_0] : memref<32x32xf32, #tpu.memory_space<vmem>>, vector<32x32xf32>
    %c0_1 = arith.constant 0 : index
    %c0_2 = arith.constant 0 : index
    %1 = vector.load %arg0[%c0_1, %c0_2] : memref<64x16xf32, #tpu.memory_space<vmem>>, vector<64x16xf32>
    %2 = vector.extract_strided_slice %0 {offsets = [0, 0], sizes = [16, 32], strides = [1, 1]} : vector<32x32xf32> to vector<16x32xf32>
    %cst = arith.constant dense<0.000000e+00> : vector<64x32xf32>
    %3 = tpu.matmul %1, %2, %cst {dimension_numbers = #tpu.dot_dimension_numbers<[1], [0], [0], [1], [0, 0, 1, 1], [], []>} : vector<64x16xf32>, vector<16x32xf32>, vector<64x32xf32> -> vector<64x32xf32>
    %4 = vector.extract_strided_slice %3 {offsets = [0, 0], sizes = [16, 32], strides = [1, 1]} : vector<64x32xf32> to vector<16x32xf32>
    %c0_3 = arith.constant 0 : index
    %c0_4 = arith.constant 0 : index
    %c0_5 = arith.constant 0 : index
    %5 = vector.load %arg3[%c0_3, %c0_4, %c0_5] : memref<7x32x32xf32, #tpu.memory_space<vmem>>, vector<1x32x32xf32>
    %6 = vector.shape_cast %5 : vector<1x32x32xf32> to vector<32x32xf32>
    %cst_6 = arith.constant dense<0.000000e+00> : vector<16x32xf32>
    %7 = tpu.matmul %4, %6, %cst_6 {dimension_numbers = #tpu.dot_dimension_numbers<[1], [0], [0], [1], [0, 0, 1, 1], [], []>} : vector<16x32xf32>, vector<32x32xf32>, vector<16x32xf32> -> vector<16x32xf32>
    %cst_7 = arith.constant 0.000000e+00 : f32
    %8 = vector.broadcast %cst_7 : f32 to vector<16x32xf32>
    %9 = arith.maximumf %7, %8 : vector<16x32xf32>
    %10 = vector.extract_strided_slice %3 {offsets = [16, 0], sizes = [16, 32], strides = [1, 1]} : vector<64x32xf32> to vector<16x32xf32>
    %c1 = arith.constant 1 : index
    %c0_8 = arith.constant 0 : index
    %c0_9 = arith.constant 0 : index
    %11 = vector.load %arg3[%c1, %c0_8, %c0_9] : memref<7x32x32xf32, #tpu.memory_space<vmem>>, vector<1x32x32xf32>
    %12 = vector.shape_cast %11 : vector<1x32x32xf32> to vector<32x32xf32>
    %cst_10 = arith.constant dense<0.000000e+00> : vector<16x32xf32>
    %13 = tpu.matmul %10, %12, %cst_10 {dimension_numbers = #tpu.dot_dimension_numbers<[1], [0], [0], [1], [0, 0, 1, 1], [], []>} : vector<16x32xf32>, vector<32x32xf32>, vector<16x32xf32> -> vector<16x32xf32>
    %cst_11 = arith.constant 0.000000e+00 : f32
    %14 = vector.broadcast %cst_11 : f32 to vector<16x32xf32>
    %15 = arith.maximumf %13, %14 : vector<16x32xf32>
    %16 = arith.addf %9, %15 : vector<16x32xf32>
    %17 = vector.extract_strided_slice %3 {offsets = [32, 0], sizes = [16, 32], strides = [1, 1]} : vector<64x32xf32> to vector<16x32xf32>
    %c2 = arith.constant 2 : index
    %c0_12 = arith.constant 0 : index
    %c0_13 = arith.constant 0 : index
    %18 = vector.load %arg3[%c2, %c0_12, %c0_13] : memref<7x32x32xf32, #tpu.memory_space<vmem>>, vector<1x32x32xf32>
    %19 = vector.shape_cast %18 : vector<1x32x32xf32> to vector<32x32xf32>
    %cst_14 = arith.constant dense<0.000000e+00> : vector<16x32xf32>
    %20 = tpu.matmul %17, %19, %cst_14 {dimension_numbers = #tpu.dot_dimension_numbers<[1], [0], [0], [1], [0, 0, 1, 1], [], []>} : vector<16x32xf32>, vector<32x32xf32>, vector<16x32xf32> -> vector<16x32xf32>
    %cst_15 = arith.constant 0.000000e+00 : f32
    %21 = vector.broadcast %cst_15 : f32 to vector<16x32xf32>
    %22 = arith.maximumf %20, %21 : vector<16x32xf32>
    %23 = arith.addf %16, %22 : vector<16x32xf32>
    %24 = vector.extract_strided_slice %3 {offsets = [48, 0], sizes = [16, 32], strides = [1, 1]} : vector<64x32xf32> to vector<16x32xf32>
    %c3 = arith.constant 3 : index
    %c0_16 = arith.constant 0 : index
    %c0_17 = arith.constant 0 : index
    %25 = vector.load %arg3[%c3, %c0_16, %c0_17] : memref<7x32x32xf32, #tpu.memory_space<vmem>>, vector<1x32x32xf32>
    %26 = vector.shape_cast %25 : vector<1x32x32xf32> to vector<32x32xf32>
    %cst_18 = arith.constant dense<0.000000e+00> : vector<16x32xf32>
    %27 = tpu.matmul %24, %26, %cst_18 {dimension_numbers = #tpu.dot_dimension_numbers<[1], [0], [0], [1], [0, 0, 1, 1], [], []>} : vector<16x32xf32>, vector<32x32xf32>, vector<16x32xf32> -> vector<16x32xf32>
    %cst_19 = arith.constant 0.000000e+00 : f32
    %28 = vector.broadcast %cst_19 : f32 to vector<16x32xf32>
    %29 = arith.maximumf %27, %28 : vector<16x32xf32>
    %30 = arith.addf %23, %29 : vector<16x32xf32>
    %cst_20 = arith.constant 2.500000e-01 : f32
    %31 = vector.broadcast %cst_20 : f32 to vector<16x32xf32>
    %32 = arith.mulf %30, %31 : vector<16x32xf32>
    %c0_21 = arith.constant 0 : index
    %c0_22 = arith.constant 0 : index
    %33 = vector.load %arg1[%c0_21, %c0_22] : memref<32x16xf32, #tpu.memory_space<vmem>>, vector<32x16xf32>
    %34 = vector.extract_strided_slice %0 {offsets = [16, 0], sizes = [16, 32], strides = [1, 1]} : vector<32x32xf32> to vector<16x32xf32>
    %cst_23 = arith.constant dense<0.000000e+00> : vector<32x32xf32>
    %35 = tpu.matmul %33, %34, %cst_23 {dimension_numbers = #tpu.dot_dimension_numbers<[1], [0], [0], [1], [0, 0, 1, 1], [], []>} : vector<32x16xf32>, vector<16x32xf32>, vector<32x32xf32> -> vector<32x32xf32>
    %36 = vector.extract_strided_slice %35 {offsets = [0, 0], sizes = [16, 32], strides = [1, 1]} : vector<32x32xf32> to vector<16x32xf32>
    %c4 = arith.constant 4 : index
    %c0_24 = arith.constant 0 : index
    %c0_25 = arith.constant 0 : index
    %37 = vector.load %arg3[%c4, %c0_24, %c0_25] : memref<7x32x32xf32, #tpu.memory_space<vmem>>, vector<1x32x32xf32>
    %38 = vector.shape_cast %37 : vector<1x32x32xf32> to vector<32x32xf32>
    %cst_26 = arith.constant dense<0.000000e+00> : vector<16x32xf32>
    %39 = tpu.matmul %36, %38, %cst_26 {dimension_numbers = #tpu.dot_dimension_numbers<[1], [0], [0], [1], [0, 0, 1, 1], [], []>} : vector<16x32xf32>, vector<32x32xf32>, vector<16x32xf32> -> vector<16x32xf32>
    %cst_27 = arith.constant 0.000000e+00 : f32
    %40 = vector.broadcast %cst_27 : f32 to vector<16x32xf32>
    %41 = arith.maximumf %39, %40 : vector<16x32xf32>
    %42 = vector.extract_strided_slice %35 {offsets = [16, 0], sizes = [16, 32], strides = [1, 1]} : vector<32x32xf32> to vector<16x32xf32>
    %c5 = arith.constant 5 : index
    %c0_28 = arith.constant 0 : index
    %c0_29 = arith.constant 0 : index
    %43 = vector.load %arg3[%c5, %c0_28, %c0_29] : memref<7x32x32xf32, #tpu.memory_space<vmem>>, vector<1x32x32xf32>
    %44 = vector.shape_cast %43 : vector<1x32x32xf32> to vector<32x32xf32>
    %cst_30 = arith.constant dense<0.000000e+00> : vector<16x32xf32>
    %45 = tpu.matmul %42, %44, %cst_30 {dimension_numbers = #tpu.dot_dimension_numbers<[1], [0], [0], [1], [0, 0, 1, 1], [], []>} : vector<16x32xf32>, vector<32x32xf32>, vector<16x32xf32> -> vector<16x32xf32>
    %cst_31 = arith.constant 0.000000e+00 : f32
    %46 = vector.broadcast %cst_31 : f32 to vector<16x32xf32>
    %47 = arith.maximumf %45, %46 : vector<16x32xf32>
    %48 = arith.addf %41, %47 : vector<16x32xf32>
    %cst_32 = arith.constant 5.000000e-01 : f32
    %49 = vector.broadcast %cst_32 : f32 to vector<16x32xf32>
    %50 = arith.mulf %48, %49 : vector<16x32xf32>
    %c0_33 = arith.constant 0 : index
    %c0_34 = arith.constant 0 : index
    %51 = vector.load %arg4[%c0_33, %c0_34] : memref<32x32xf32, #tpu.memory_space<vmem>>, vector<32x32xf32>
    %52 = vector.extract_strided_slice %51 {offsets = [0, 0], sizes = [32, 16], strides = [1, 1]} : vector<32x32xf32> to vector<32x16xf32>
    %cst_35 = arith.constant dense<0.000000e+00> : vector<32x32xf32>
    %53 = tpu.matmul %52, %32, %cst_35 {dimension_numbers = #tpu.dot_dimension_numbers<[1], [0], [0], [1], [0, 0, 1, 1], [], []>} : vector<32x16xf32>, vector<16x32xf32>, vector<32x32xf32> -> vector<32x32xf32>
    %54 = vector.extract_strided_slice %51 {offsets = [0, 16], sizes = [32, 16], strides = [1, 1]} : vector<32x32xf32> to vector<32x16xf32>
    %cst_36 = arith.constant dense<0.000000e+00> : vector<32x32xf32>
    %55 = tpu.matmul %54, %50, %cst_36 {dimension_numbers = #tpu.dot_dimension_numbers<[1], [0], [0], [1], [0, 0, 1, 1], [], []>} : vector<32x16xf32>, vector<16x32xf32>, vector<32x32xf32> -> vector<32x32xf32>
    %56 = arith.addf %53, %55 : vector<32x32xf32>
    %c6 = arith.constant 6 : index
    %c0_37 = arith.constant 0 : index
    %c0_38 = arith.constant 0 : index
    %57 = vector.load %arg3[%c6, %c0_37, %c0_38] : memref<7x32x32xf32, #tpu.memory_space<vmem>>, vector<1x32x32xf32>
    %58 = vector.shape_cast %57 : vector<1x32x32xf32> to vector<32x32xf32>
    %cst_39 = arith.constant dense<0.000000e+00> : vector<32x32xf32>
    %59 = tpu.matmul %56, %58, %cst_39 {dimension_numbers = #tpu.dot_dimension_numbers<[1], [0], [0], [1], [0, 0, 1, 1], [], []>} : vector<32x32xf32>, vector<32x32xf32>, vector<32x32xf32> -> vector<32x32xf32>
    %cst_40 = arith.constant 0.000000e+00 : f32
    %60 = vector.broadcast %cst_40 : f32 to vector<32x32xf32>
    %61 = arith.maximumf %59, %60 : vector<32x32xf32>
    %c0_41 = arith.constant 0 : index
    %c0_42 = arith.constant 0 : index
    %62 = vector.load %arg5[%c0_41, %c0_42] : memref<32x32xf32, #tpu.memory_space<vmem>>, vector<32x32xf32>
    tpu.vector_store %arg5[%c0_41, %c0_42], %61 {strides = array<i32>} : memref<32x32xf32, #tpu.memory_space<vmem>>, vector<32x32xf32>,
    return
  }
}

</mosaic_0001>

<llo_original>
// kernel: a_call__.1
$region0: #{a_call__.1}
  #allocation0 [shape = 'u32[]', space=smem, size = 0x4, offset = 0x4, fixed_abs, tag = 'smem constant byte address 0x4 - core index']
  #allocation1 [shape = 'u32[144,128]{1,0:T(1,128)}', space=vmem, size = 0x12000, scoped, tag = 'internal scratch']
  %s0 = inlined_call_operand.vmem [shape: f32[64,16], index: 0, kind: input, shape index: {}]
  %s1 = inlined_call_operand.hbm [shape: f32[32,16], index: 1, kind: input, shape index: {}]
  %s2 = inlined_call_operand.vmem [shape: f32[32,32], index: 2, kind: input, shape index: {}]
  %s3 = inlined_call_operand.hbm [shape: f32[7,32,32], index: 3, kind: input, shape index: {}]
  %s4 = inlined_call_operand.hbm [shape: f32[32,32], index: 4, kind: input, shape index: {}]
  %s5 = inlined_call_operand.vmem [shape: f32[32,32], index: 5, kind: output, shape index: {}]
  %s6 = sld [smem:[#allocation0]]
  $region42: #{a_call__.1} parent=0
    _
  %s8 = ssub.s32 1, %s6
  %s9 = scalar_select 0, %s8, %s6
  $region1: #{a_call__.1} parent=0
    #allocation2 [shape = 'u8[16384]{0}', space=vmem, size = 0x4000, scoped, tag = 'input window, operand 1, single buffered']
    #allocation3 [shape = 's32[1]{0}', space=sflag, size = 0x4, scoped, tag = 'scoped memory for a_call__.1']
    #allocation4 [shape = 'u8[114688]{0}', space=vmem, size = 0x1c000, scoped, tag = 'input window, operand 3, single buffered']
    #allocation5 [shape = 's32[1]{0}', space=sflag, size = 0x4, scoped, tag = 'scoped memory for a_call__.1']
    #allocation6 [shape = 'u8[16384]{0}', space=vmem, size = 0x4000, scoped, tag = 'input window, operand 4, single buffered']
    %10 = vsyncpa [#allocation3], 0
    %11 = vsyncpa [#allocation5], 0
    // Predicated region
    $region2: #{a_call__.1} parent=1 // pred_check
      _
    $region3: #{a_call__.1} parent=1 // pred_check_branch
      %13 = sbr.rel (0) target = $region5
    $region4: #{a_call__.1} parent=1 // pred_region
      _
    $region5: #{a_call__.1} parent=1 // pred_fallthru
      _
    // Predicated region
    $region6: #{a_call__.1} parent=1 // pred_check
      _
    $region7: #{a_call__.1} parent=1 // pred_check_branch
      %15 = sbr.rel (0) target = $region9
    $region8: #{a_call__.1} parent=1 // pred_region
      %s17 = ssub.s32 512, 512
      %18 = vsyncadd [#allocation3], %s17
      %s19 = sshll.u32 [#allocation2], 4
      %s20 = int_to_ptr.vmem [resolvable:$true] %s19
      %25 = dma.hbm_to_vmem [thread:$0]  %s1, 512, %s20, [#allocation3], 128, 128, 8
    $region9: #{a_call__.1} parent=1 // pred_fallthru
      _
    // Predicated region
    $region10: #{a_call__.1} parent=1 // pred_check
      _
    $region11: #{a_call__.1} parent=1 // pred_check_branch
      %27 = sbr.rel (0) target = $region13
    $region12: #{a_call__.1} parent=1 // pred_region
      _
    $region13: #{a_call__.1} parent=1 // pred_fallthru
      _
    // Predicated region
    $region14: #{a_call__.1} parent=1 // pred_check
      _
    $region15: #{a_call__.1} parent=1 // pred_check_branch
      %29 = sbr.rel (0) target = $region17
    $region16: #{a_call__.1} parent=1 // pred_region
      %s31 = ssub.s32 3584, 3584
      %32 = vsyncadd [#allocation5], %s31
      %s33 = sshll.u32 [#allocation4], 4
      %s34 = int_to_ptr.vmem [resolvable:$true] %s33
      %39 = dma.hbm_to_vmem [thread:$0]  %s3, 3584, %s34, [#allocation5], 128, 128, 8
    $region17: #{a_call__.1} parent=1 // pred_fallthru
      _
    // Predicated region
    $region18: #{a_call__.1} parent=1 // pred_check
      _
    $region19: #{a_call__.1} parent=1 // pred_check_branch
      %41 = sbr.rel (0) target = $region21
    $region20: #{a_call__.1} parent=1 // pred_region
      %s43 = ssub.s32 512, 512
      %44 = vsyncadd [#allocation5], %s43
      %s45 = sshll.u32 [#allocation6], 4
      %s46 = int_to_ptr.vmem [resolvable:$true] %s45
      %51 = dma.hbm_to_vmem [thread:$0]  %s4, 512, %s46, [#allocation5], 128, 128, 8
    $region21: #{a_call__.1} parent=1 // pred_fallthru
      _
    // Predicated region
    $region22: #{a_call__.1} parent=1 // pred_check
      _
    $region23: #{a_call__.1} parent=1 // pred_check_branch
      %53 = sbr.rel (0) target = $region25
    $region24: #{a_call__.1} parent=1 // pred_region
      %54 = dma.done [#allocation3], 512
    $region25: #{a_call__.1} parent=1 // pred_fallthru
      _
    // Predicated region
    $region26: #{a_call__.1} parent=1 // pred_check
      _
    $region27: #{a_call__.1} parent=1 // pred_check_branch
      %56 = sbr.rel (0) target = $region29
    $region28: #{a_call__.1} parent=1 // pred_region
      %57 = dma.done [#allocation5], 3584
    $region29: #{a_call__.1} parent=1 // pred_fallthru
      _
    // Predicated region
    $region30: #{a_call__.1} parent=1 // pred_check
      _
    $region31: #{a_call__.1} parent=1 // pred_check_branch
      %59 = sbr.rel (0) target = $region33
    $region32: #{a_call__.1} parent=1 // pred_region
      %60 = dma.done [#allocation5], 512
    $region33: #{a_call__.1} parent=1 // pred_fallthru
      _
    %v61 = vld [vmem:[%s2] sm:$0xff]
    %v62 = vld [vmem:[%s2 + $0x8] sm:$0xff]
    %v63 = vld [vmem:[%s2 + $0x10] sm:$0xff]
    %v64 = vld [vmem:[%s2 + $0x18] sm:$0xff]
    %v65 = vld [vmem:[%s0] sm:$0xff]
    %v66 = vld [vmem:[%s0 + $0x8] sm:$0xff]
    %v67 = vld [vmem:[%s0 + $0x10] sm:$0xff]
    %v68 = vld [vmem:[%s0 + $0x18] sm:$0xff]
    %v69 = vld [vmem:[%s0 + $0x20] sm:$0xff]
    %v70 = vld [vmem:[%s0 + $0x28] sm:$0xff]
    %v71 = vld [vmem:[%s0 + $0x30] sm:$0xff]
    %v72 = vld [vmem:[%s0 + $0x38] sm:$0xff]
    %vm73 = vcmask 130048
    %v75 = vsel %vm73, %v65, 0
    %v78 = vsel %vm73, %v66, 0
    %v81 = vsel %vm73, %v67, 0
    %v84 = vsel %vm73, %v68, 0
    %v87 = vsel %vm73, %v69, 0
    %v90 = vsel %vm73, %v70, 0
    %v93 = vsel %vm73, %v71, 0
    %v96 = vsel %vm73, %v72, 0
    %98 = vmatprep.subr.mxu0 0.0
    %99 = vmatpush1.msra.mxu0 %v61
    %100 = vmatprep.subr.mxu0 0.0
    %101 = vmatpush1.msra.mxu0 %v62
    %102 = vmatprep.subr.mxu0 0.0
    %103 = vmatpush1.msra.mxu0 0.0
    %104 = vmatprep.subr.mxu0 0.0
    %105 = vmatpush1.msra.mxu0 0.0
    %106 = vmatprep.subr.mxu0 0.0
    %107 = vmatpush1.msra.mxu0 0.0
    %108 = vmatprep.subr.mxu0 0.0
    %109 = vmatpush1.msra.mxu0 0.0
    %110 = vmatprep.subr.mxu0 0.0
    %111 = vmatpush1.msra.mxu0 0.0
    %112 = vmatprep.subr.mxu0 0.0
    %113 = vmatpush1.msra.mxu0 0.0
    %114 = vmatprep.subr.mxu0 0.0
    %115 = vmatpush1.msra.mxu0 0.0
    %116 = vmatprep.subr.mxu0 0.0
    %117 = vmatpush1.msra.mxu0 0.0
    %118 = vmatprep.subr.mxu0 0.0
    %119 = vmatpush1.msra.mxu0 0.0
    %120 = vmatprep.subr.mxu0 0.0
    %121 = vmatpush1.msra.mxu0 0.0
    %122 = vmatprep.subr.mxu0 0.0
    %123 = vmatpush1.msra.mxu0 0.0
    %124 = vmatprep.subr.mxu0 0.0
    %125 = vmatpush1.msra.mxu0 0.0
    %126 = vmatprep.subr.mxu0 0.0
    %127 = vmatpush1.msra.mxu0 0.0
    %128 = vmatprep.subr.mxu0 0.0
    %129 = vmatpush1.msra.mxu0 0.0
    %130 = vmatprep.subr.mxu0 0.0
    %131 = vmatpush1.msra.mxu0 0.0
    %132 = vmatprep.subr.mxu0 0.0
    %133 = vmatpush1.msra.mxu0 0.0
    %134 = vmatprep.subr.mxu0 0.0
    %135 = vmatpush1.msra.mxu0 0.0
    %136 = vmatprep.subr.mxu0 0.0
    %137 = vmatpush1.msra.mxu0 0.0
    %138 = vmatprep.subr.mxu0 0.0
    %139 = vmatpush1.msra.mxu0 0.0
    %140 = vmatprep.subr.mxu0 0.0
    %141 = vmatpush1.msra.mxu0 0.0
    %142 = vmatprep.subr.mxu0 0.0
    %143 = vmatpush1.msra.mxu0 0.0
    %144 = vmatprep.subr.mxu0 0.0
    %145 = vmatpush1.msra.mxu0 0.0
    %146 = vmatprep.subr.mxu0 0.0
    %147 = vmatpush1.msra.mxu0 0.0
    %148 = vmatprep.subr.mxu0 0.0
    %149 = vmatpush1.msra.mxu0 0.0
    %150 = vmatprep.subr.mxu0 0.0
    %151 = vmatpush1.msra.mxu0 0.0
    %152 = vmatprep.subr.mxu0 0.0
    %153 = vmatpush1.msra.mxu0 0.0
    %154 = vmatprep.subr.mxu0 0.0
    %155 = vmatpush1.msra.mxu0 0.0
    %156 = vmatprep.subr.mxu0 0.0
    %157 = vmatpush1.msra.mxu0 0.0
    %158 = vmatprep.subr.mxu0 0.0
    %159 = vmatpush1.msra.mxu0 0.0
    %160 = vmatprep.subr.mxu0 0.0
    %161 = vmatpush1.msra.mxu0 0.0
    %162 = vmatprep.mubr.f32.mxu0 0.0
    %163 = vmatmul.mubr.f32.gmra.mrb[0].mxu0 %v75
    %v164 = vpop.f32.mrb[0].mxu0
    %v165 = vadd.f32 0.0, %v164
    %v166 = vpop.f32.mrb[0].mxu0
    %167 = vmatprep.mubr.f32.mxu0 0.0
    %168 = vmatmul.mubr.f32.gmra.mrb[0].mxu0 %v78
    %v169 = vpop.f32.mrb[0].mxu0
    %v170 = vadd.f32 0.0, %v169
    %v171 = vpop.f32.mrb[0].mxu0
    %172 = vmatprep.mubr.f32.mxu0 0.0
    %173 = vmatmul.mubr.f32.gmra.mrb[0].mxu0 %v81
    %v174 = vpop.f32.mrb[0].mxu0
    %v175 = vadd.f32 0.0, %v174
    %v176 = vpop.f32.mrb[0].mxu0
    %177 = vmatprep.mubr.f32.mxu0 0.0
    %178 = vmatmul.mubr.f32.gmra.mrb[0].mxu0 %v84
    %v179 = vpop.f32.mrb[0].mxu0
    %v180 = vadd.f32 0.0, %v179
    %v181 = vpop.f32.mrb[0].mxu0
    %182 = vmatprep.mubr.f32.mxu0 0.0
    %183 = vmatmul.mubr.f32.gmra.mrb[0].mxu0 %v87
    %v184 = vpop.f32.mrb[0].mxu0
    %v185 = vadd.f32 0.0, %v184
    %v186 = vpop.f32.mrb[0].mxu0
    %187 = vmatprep.mubr.f32.mxu0 0.0
    %188 = vmatmul.mubr.f32.gmra.mrb[0].mxu0 %v90
    %v189 = vpop.f32.mrb[0].mxu0
    %v190 = vadd.f32 0.0, %v189
    %v191 = vpop.f32.mrb[0].mxu0
    %192 = vmatprep.mubr.f32.mxu0 0.0
    %193 = vmatmul.mubr.f32.gmra.mrb[0].mxu0 %v93
    %v194 = vpop.f32.mrb[0].mxu0
    %v195 = vadd.f32 0.0, %v194
    %v196 = vpop.f32.mrb[0].mxu0
    %197 = vmatprep.mubr.f32.mxu0 0.0
    %198 = vmatmul.mubr.f32.gmra.mrb[0].mxu0 %v96
    %v199 = vpop.f32.mrb[0].mxu0
    %v200 = vadd.f32 0.0, %v199
    %v201 = vpop.f32.mrb[0].mxu0
    %202 = vdwg.mxu0
    %v203 = vld [vmem:[#allocation4] sm:$0xff]
    %v204 = vld [vmem:[#allocation4 + $0x8] sm:$0xff]
    %v205 = vld [vmem:[#allocation4 + $0x10] sm:$0xff]
    %v206 = vld [vmem:[#allocation4 + $0x18] sm:$0xff]
    %vm207 = vcmask 261120
    %v209 = vsel %vm207, %v165, 0
    %v212 = vsel %vm207, %v170, 0
    %214 = vmatprep.subr.mxu0 0.0
    %215 = vmatpush1.msra.mxu0 %v203
    %216 = vmatprep.subr.mxu0 0.0
    %217 = vmatpush1.msra.mxu0 %v204
    %218 = vmatprep.subr.mxu0 0.0
    %219 = vmatpush1.msra.mxu0 %v205
    %220 = vmatprep.subr.mxu0 0.0
    %221 = vmatpush1.msra.mxu0 %v206
    %222 = vmatprep.subr.mxu0 0.0
    %223 = vmatpush1.msra.mxu0 0.0
    %224 = vmatprep.subr.mxu0 0.0
    %225 = vmatpush1.msra.mxu0 0.0
    %226 = vmatprep.subr.mxu0 0.0
    %227 = vmatpush1.msra.mxu0 0.0
    %228 = vmatprep.subr.mxu0 0.0
    %229 = vmatpush1.msra.mxu0 0.0
    %230 = vmatprep.subr.mxu0 0.0
    %231 = vmatpush1.msra.mxu0 0.0
    %232 = vmatprep.subr.mxu0 0.0
    %233 = vmatpush1.msra.mxu0 0.0
    %234 = vmatprep.subr.mxu0 0.0
    %235 = vmatpush1.msra.mxu0 0.0
    %236 = vmatprep.subr.mxu0 0.0
    %237 = vmatpush1.msra.mxu0 0.0
    %238 = vmatprep.subr.mxu0 0.0
    %239 = vmatpush1.msra.mxu0 0.0
    %240 = vmatprep.subr.mxu0 0.0
    %241 = vmatpush1.msra.mxu0 0.0
    %242 = vmatprep.subr.mxu0 0.0
    %243 = vmatpush1.msra.mxu0 0.0
    %244 = vmatprep.subr.mxu0 0.0
    %245 = vmatpush1.msra.mxu0 0.0
    %246 = vmatprep.subr.mxu0 0.0
    %247 = vmatpush1.msra.mxu0 0.0
    %248 = vmatprep.subr.mxu0 0.0
    %249 = vmatpush1.msra.mxu0 0.0
    %250 = vmatprep.subr.mxu0 0.0
    %251 = vmatpush1.msra.mxu0 0.0
    %252 = vmatprep.subr.mxu0 0.0
    %253 = vmatpush1.msra.mxu0 0.0
    %254 = vmatprep.subr.mxu0 0.0
    %255 = vmatpush1.msra.mxu0 0.0
    %256 = vmatprep.subr.mxu0 0.0
    %257 = vmatpush1.msra.mxu0 0.0
    %258 = vmatprep.subr.mxu0 0.0
    %259 = vmatpush1.msra.mxu0 0.0
    %260 = vmatprep.subr.mxu0 0.0
    %261 = vmatpush1.msra.mxu0 0.0
    %262 = vmatprep.subr.mxu0 0.0
    %263 = vmatpush1.msra.mxu0 0.0
    %264 = vmatprep.subr.mxu0 0.0
    %265 = vmatpush1.msra.mxu0 0.0
    %266 = vmatprep.subr.mxu0 0.0
    %267 = vmatpush1.msra.mxu0 0.0
    %268 = vmatprep.subr.mxu0 0.0
    %269 = vmatpush1.msra.mxu0 0.0
    %270 = vmatprep.subr.mxu0 0.0
    %271 = vmatpush1.msra.mxu0 0.0
    %272 = vmatprep.subr.mxu0 0.0
    %273 = vmatpush1.msra.mxu0 0.0
    %274 = vmatprep.subr.mxu0 0.0
    %275 = vmatpush1.msra.mxu0 0.0
    %276 = vmatprep.subr.mxu0 0.0
    %277 = vmatpush1.msra.mxu0 0.0
    %278 = vmatprep.mubr.f32.mxu0 0.0
    %279 = vmatmul.mubr.f32.gmra.mrb[0].mxu0 %v209
    %v280 = vpop.f32.mrb[0].mxu0
    %v281 = vadd.f32 0.0, %v280
    %v282 = vpop.f32.mrb[0].mxu0
    %283 = vmatprep.mubr.f32.mxu0 0.0
    %284 = vmatmul.mubr.f32.gmra.mrb[0].mxu0 %v212
    %v285 = vpop.f32.mrb[0].mxu0
    %v286 = vadd.f32 0.0, %v285
    %v287 = vpop.f32.mrb[0].mxu0
    %288 = vdwg.mxu0
    %v289 = vmax.f32 %v281, 0.0
    %v290 = vmax.f32 %v286, 0.0
    %s291 = scalar_lea.vmem [#allocation4], 32
    %v292 = vld [vmem:[%s291] sm:$0xff]
    %v293 = vld [vmem:[%s291 + $0x8] sm:$0xff]
    %v294 = vld [vmem:[%s291 + $0x10] sm:$0xff]
    %v295 = vld [vmem:[%s291 + $0x18] sm:$0xff]
    %v297 = vsel %vm207, %v175, 0
    %v300 = vsel %vm207, %v180, 0
    %302 = vmatprep.subr.mxu0 0.0
    %303 = vmatpush1.msra.mxu0 %v292
    %304 = vmatprep.subr.mxu0 0.0
    %305 = vmatpush1.msra.mxu0 %v293
    %306 = vmatprep.subr.mxu0 0.0
    %307 = vmatpush1.msra.mxu0 %v294
    %308 = vmatprep.subr.mxu0 0.0
    %309 = vmatpush1.msra.mxu0 %v295
    %310 = vmatprep.subr.mxu0 0.0
    %311 = vmatpush1.msra.mxu0 0.0
    %312 = vmatprep.subr.mxu0 0.0
    %313 = vmatpush1.msra.mxu0 0.0
    %314 = vmatprep.subr.mxu0 0.0
    %315 = vmatpush1.msra.mxu0 0.0
    %316 = vmatprep.subr.mxu0 0.0
    %317 = vmatpush1.msra.mxu0 0.0
    %318 = vmatprep.subr.mxu0 0.0
    %319 = vmatpush1.msra.mxu0 0.0
    %320 = vmatprep.subr.mxu0 0.0
    %321 = vmatpush1.msra.mxu0 0.0
    %322 = vmatprep.subr.mxu0 0.0
    %323 = vmatpush1.msra.mxu0 0.0
    %324 = vmatprep.subr.mxu0 0.0
    %325 = vmatpush1.msra.mxu0 0.0
    %326 = vmatprep.subr.mxu0 0.0
    %327 = vmatpush1.msra.mxu0 0.0
    %328 = vmatprep.subr.mxu0 0.0
    %329 = vmatpush1.msra.mxu0 0.0
    %330 = vmatprep.subr.mxu0 0.0
    %331 = vmatpush1.msra.mxu0 0.0
    %332 = vmatprep.subr.mxu0 0.0
    %333 = vmatpush1.msra.mxu0 0.0
    %334 = vmatprep.subr.mxu0 0.0
    %335 = vmatpush1.msra.mxu0 0.0
    %336 = vmatprep.subr.mxu0 0.0
    %337 = vmatpush1.msra.mxu0 0.0
    %338 = vmatprep.subr.mxu0 0.0
    %339 = vmatpush1.msra.mxu0 0.0
    %340 = vmatprep.subr.mxu0 0.0
    %341 = vmatpush1.msra.mxu0 0.0
    %342 = vmatprep.subr.mxu0 0.0
    %343 = vmatpush1.msra.mxu0 0.0
    %344 = vmatprep.subr.mxu0 0.0
    %345 = vmatpush1.msra.mxu0 0.0
    %346 = vmatprep.subr.mxu0 0.0
    %347 = vmatpush1.msra.mxu0 0.0
    %348 = vmatprep.subr.mxu0 0.0
    %349 = vmatpush1.msra.mxu0 0.0
    %350 = vmatprep.subr.mxu0 0.0
    %351 = vmatpush1.msra.mxu0 0.0
    %352 = vmatprep.subr.mxu0 0.0
    %353 = vmatpush1.msra.mxu0 0.0
    %354 = vmatprep.subr.mxu0 0.0
    %355 = vmatpush1.msra.mxu0 0.0
    %356 = vmatprep.subr.mxu0 0.0
    %357 = vmatpush1.msra.mxu0 0.0
    %358 = vmatprep.subr.mxu0 0.0
    %359 = vmatpush1.msra.mxu0 0.0
    %360 = vmatprep.subr.mxu0 0.0
    %361 = vmatpush1.msra.mxu0 0.0
    %362 = vmatprep.subr.mxu0 0.0
    %363 = vmatpush1.msra.mxu0 0.0
    %364 = vmatprep.subr.mxu0 0.0
    %365 = vmatpush1.msra.mxu0 0.0
    %366 = vmatprep.mubr.f32.mxu0 0.0
    %367 = vmatmul.mubr.f32.gmra.mrb[0].mxu0 %v297
    %v368 = vpop.f32.mrb[0].mxu0
    %v369 = vadd.f32 0.0, %v368
    %v370 = vpop.f32.mrb[0].mxu0
    %371 = vmatprep.mubr.f32.mxu0 0.0
    %372 = vmatmul.mubr.f32.gmra.mrb[0].mxu0 %v300
    %v373 = vpop.f32.mrb[0].mxu0
    %v374 = vadd.f32 0.0, %v373
    %v375 = vpop.f32.mrb[0].mxu0
    %376 = vdwg.mxu0
    %v377 = vmax.f32 %v369, 0.0
    %v378 = vmax.f32 %v374, 0.0
    %v379 = vadd.f32 %v289, %v377
    %v380 = vadd.f32 %v290, %v378
    %s381 = scalar_lea.vmem [#allocation4], 64
    %v382 = vld [vmem:[%s381] sm:$0xff]
    %v383 = vld [vmem:[%s381 + $0x8] sm:$0xff]
    %v384 = vld [vmem:[%s381 + $0x10] sm:$0xff]
    %v385 = vld [vmem:[%s381 + $0x18] sm:$0xff]
    %v387 = vsel %vm207, %v185, 0
    %v390 = vsel %vm207, %v190, 0
    %392 = vmatprep.subr.mxu0 0.0
    %393 = vmatpush1.msra.mxu0 %v382
    %394 = vmatprep.subr.mxu0 0.0
    %395 = vmatpush1.msra.mxu0 %v383
    %396 = vmatprep.subr.mxu0 0.0
    %397 = vmatpush1.msra.mxu0 %v384
    %398 = vmatprep.subr.mxu0 0.0
    %399 = vmatpush1.msra.mxu0 %v385
    %400 = vmatprep.subr.mxu0 0.0
    %401 = vmatpush1.msra.mxu0 0.0
    %402 = vmatprep.subr.mxu0 0.0
    %403 = vmatpush1.msra.mxu0 0.0
    %404 = vmatprep.subr.mxu0 0.0
    %405 = vmatpush1.msra.mxu0 0.0
    %406 = vmatprep.subr.mxu0 0.0
    %407 = vmatpush1.msra.mxu0 0.0
    %408 = vmatprep.subr.mxu0 0.0
    %409 = vmatpush1.msra.mxu0 0.0
    %410 = vmatprep.subr.mxu0 0.0
    %411 = vmatpush1.msra.mxu0 0.0
    %412 = vmatprep.subr.mxu0 0.0
    %413 = vmatpush1.msra.mxu0 0.0
    %414 = vmatprep.subr.mxu0 0.0
    %415 = vmatpush1.msra.mxu0 0.0
    %416 = vmatprep.subr.mxu0 0.0
    %417 = vmatpush1.msra.mxu0 0.0
    %418 = vmatprep.subr.mxu0 0.0
    %419 = vmatpush1.msra.mxu0 0.0
    %420 = vmatprep.subr.mxu0 0.0
    %421 = vmatpush1.msra.mxu0 0.0
    %422 = vmatprep.subr.mxu0 0.0
    %423 = vmatpush1.msra.mxu0 0.0
    %424 = vmatprep.subr.mxu0 0.0
    %425 = vmatpush1.msra.mxu0 0.0
    %426 = vmatprep.subr.mxu0 0.0
    %427 = vmatpush1.msra.mxu0 0.0
    %428 = vmatprep.subr.mxu0 0.0
    %429 = vmatpush1.msra.mxu0 0.0
    %430 = vmatprep.subr.mxu0 0.0
    %431 = vmatpush1.msra.mxu0 0.0
    %432 = vmatprep.subr.mxu0 0.0
    %433 = vmatpush1.msra.mxu0 0.0
    %434 = vmatprep.subr.mxu0 0.0
    %435 = vmatpush1.msra.mxu0 0.0
    %436 = vmatprep.subr.mxu0 0.0
    %437 = vmatpush1.msra.mxu0 0.0
    %438 = vmatprep.subr.mxu0 0.0
    %439 = vmatpush1.msra.mxu0 0.0
    %440 = vmatprep.subr.mxu0 0.0
    %441 = vmatpush1.msra.mxu0 0.0
    %442 = vmatprep.subr.mxu0 0.0
    %443 = vmatpush1.msra.mxu0 0.0
    %444 = vmatprep.subr.mxu0 0.0
    %445 = vmatpush1.msra.mxu0 0.0
    %446 = vmatprep.subr.mxu0 0.0
    %447 = vmatpush1.msra.mxu0 0.0
    %448 = vmatprep.subr.mxu0 0.0
    %449 = vmatpush1.msra.mxu0 0.0
    %450 = vmatprep.subr.mxu0 0.0
    %451 = vmatpush1.msra.mxu0 0.0
    %452 = vmatprep.subr.mxu0 0.0
    %453 = vmatpush1.msra.mxu0 0.0
    %454 = vmatprep.subr.mxu0 0.0
    %455 = vmatpush1.msra.mxu0 0.0
    %456 = vmatprep.mubr.f32.mxu0 0.0
    %457 = vmatmul.mubr.f32.gmra.mrb[0].mxu0 %v387
    %v458 = vpop.f32.mrb[0].mxu0
    %v459 = vadd.f32 0.0, %v458
    %v460 = vpop.f32.mrb[0].mxu0
    %461 = vmatprep.mubr.f32.mxu0 0.0
    %462 = vmatmul.mubr.f32.gmra.mrb[0].mxu0 %v390
    %v463 = vpop.f32.mrb[0].mxu0
    %v464 = vadd.f32 0.0, %v463
    %v465 = vpop.f32.mrb[0].mxu0
    %466 = vdwg.mxu0
    %v467 = vmax.f32 %v459, 0.0
    %v468 = vmax.f32 %v464, 0.0
    %v469 = vadd.f32 %v379, %v467
    %v470 = vadd.f32 %v380, %v468
    %s471 = scalar_lea.vmem [#allocation4], 96
    %v472 = vld [vmem:[%s471] sm:$0xff]
    %v473 = vld [vmem:[%s471 + $0x8] sm:$0xff]
    %v474 = vld [vmem:[%s471 + $0x10] sm:$0xff]
    %v475 = vld [vmem:[%s471 + $0x18] sm:$0xff]
    %v477 = vsel %vm207, %v195, 0
    %v480 = vsel %vm207, %v200, 0
    %482 = vmatprep.subr.mxu0 0.0
    %483 = vmatpush1.msra.mxu0 %v472
    %484 = vmatprep.subr.mxu0 0.0
    %485 = vmatpush1.msra.mxu0 %v473
    %486 = vmatprep.subr.mxu0 0.0
    %487 = vmatpush1.msra.mxu0 %v474
    %488 = vmatprep.subr.mxu0 0.0
    %489 = vmatpush1.msra.mxu0 %v475
    %490 = vmatprep.subr.mxu0 0.0
    %491 = vmatpush1.msra.mxu0 0.0
    %492 = vmatprep.subr.mxu0 0.0
    %493 = vmatpush1.msra.mxu0 0.0
    %494 = vmatprep.subr.mxu0 0.0
    %495 = vmatpush1.msra.mxu0 0.0
    %496 = vmatprep.subr.mxu0 0.0
    %497 = vmatpush1.msra.mxu0 0.0
    %498 = vmatprep.subr.mxu0 0.0
    %499 = vmatpush1.msra.mxu0 0.0
    %500 = vmatprep.subr.mxu0 0.0
    %501 = vmatpush1.msra.mxu0 0.0
    %502 = vmatprep.subr.mxu0 0.0
    %503 = vmatpush1.msra.mxu0 0.0
    %504 = vmatprep.subr.mxu0 0.0
    %505 = vmatpush1.msra.mxu0 0.0
    %506 = vmatprep.subr.mxu0 0.0
    %507 = vmatpush1.msra.mxu0 0.0
    %508 = vmatprep.subr.mxu0 0.0
    %509 = vmatpush1.msra.mxu0 0.0
    %510 = vmatprep.subr.mxu0 0.0
    %511 = vmatpush1.msra.mxu0 0.0
    %512 = vmatprep.subr.mxu0 0.0
    %513 = vmatpush1.msra.mxu0 0.0
    %514 = vmatprep.subr.mxu0 0.0
    %515 = vmatpush1.msra.mxu0 0.0
    %516 = vmatprep.subr.mxu0 0.0
    %517 = vmatpush1.msra.mxu0 0.0
    %518 = vmatprep.subr.mxu0 0.0
    %519 = vmatpush1.msra.mxu0 0.0
    %520 = vmatprep.subr.mxu0 0.0
    %521 = vmatpush1.msra.mxu0 0.0
    %522 = vmatprep.subr.mxu0 0.0
    %523 = vmatpush1.msra.mxu0 0.0
    %524 = vmatprep.subr.mxu0 0.0
    %525 = vmatpush1.msra.mxu0 0.0
    %526 = vmatprep.subr.mxu0 0.0
    %527 = vmatpush1.msra.mxu0 0.0
    %528 = vmatprep.subr.mxu0 0.0
    %529 = vmatpush1.msra.mxu0 0.0
    %530 = vmatprep.subr.mxu0 0.0
    %531 = vmatpush1.msra.mxu0 0.0
    %532 = vmatprep.subr.mxu0 0.0
    %533 = vmatpush1.msra.mxu0 0.0
    %534 = vmatprep.subr.mxu0 0.0
    %535 = vmatpush1.msra.mxu0 0.0
    %536 = vmatprep.subr.mxu0 0.0
    %537 = vmatpush1.msra.mxu0 0.0
    %538 = vmatprep.subr.mxu0 0.0
    %539 = vmatpush1.msra.mxu0 0.0
    %540 = vmatprep.subr.mxu0 0.0
    %541 = vmatpush1.msra.mxu0 0.0
    %542 = vmatprep.subr.mxu0 0.0
    %543 = vmatpush1.msra.mxu0 0.0
    %544 = vmatprep.subr.mxu0 0.0
    %545 = vmatpush1.msra.mxu0 0.0
    %546 = vmatprep.mubr.f32.mxu0 0.0
    %547 = vmatmul.mubr.f32.gmra.mrb[0].mxu0 %v477
    %v548 = vpop.f32.mrb[0].mxu0
    %v549 = vadd.f32 0.0, %v548
    %v550 = vpop.f32.mrb[0].mxu0
    %551 = vmatprep.mubr.f32.mxu0 0.0
    %552 = vmatmul.mubr.f32.gmra.mrb[0].mxu0 %v480
    %v553 = vpop.f32.mrb[0].mxu0
    %v554 = vadd.f32 0.0, %v553
    %v555 = vpop.f32.mrb[0].mxu0
    %556 = vdwg.mxu0
    %v557 = vmax.f32 %v549, 0.0
    %v558 = vmax.f32 %v554, 0.0
    %v559 = vadd.f32 %v469, %v557
    %v560 = vadd.f32 %v470, %v558
    %v561 = vmul.f32 %v559, 0.25
    %v562 = vmul.f32 %v560, 0.25
    %v563 = vld [vmem:[#allocation2] sm:$0xff]
    %v564 = vld [vmem:[#allocation2 + $0x8] sm:$0xff]
    %v565 = vld [vmem:[#allocation2 + $0x10] sm:$0xff]
    %v566 = vld [vmem:[#allocation2 + $0x18] sm:$0xff]
    %v568 = vsel %vm73, %v563, 0
    %v571 = vsel %vm73, %v564, 0
    %v574 = vsel %vm73, %v565, 0
    %v577 = vsel %vm73, %v566, 0
    %579 = vmatprep.subr.mxu0 0.0
    %580 = vmatpush1.msra.mxu0 %v63
    %581 = vmatprep.subr.mxu0 0.0
    %582 = vmatpush1.msra.mxu0 %v64
    %583 = vmatprep.subr.mxu0 0.0
    %584 = vmatpush1.msra.mxu0 0.0
    %585 = vmatprep.subr.mxu0 0.0
    %586 = vmatpush1.msra.mxu0 0.0
    %587 = vmatprep.subr.mxu0 0.0
    %588 = vmatpush1.msra.mxu0 0.0
    %589 = vmatprep.subr.mxu0 0.0
    %590 = vmatpush1.msra.mxu0 0.0
    %591 = vmatprep.subr.mxu0 0.0
    %592 = vmatpush1.msra.mxu0 0.0
    %593 = vmatprep.subr.mxu0 0.0
    %594 = vmatpush1.msra.mxu0 0.0
    %595 = vmatprep.subr.mxu0 0.0
    %596 = vmatpush1.msra.mxu0 0.0
    %597 = vmatprep.subr.mxu0 0.0
    %598 = vmatpush1.msra.mxu0 0.0
    %599 = vmatprep.subr.mxu0 0.0
    %600 = vmatpush1.msra.mxu0 0.0
    %601 = vmatprep.subr.mxu0 0.0
    %602 = vmatpush1.msra.mxu0 0.0
    %603 = vmatprep.subr.mxu0 0.0
    %604 = vmatpush1.msra.mxu0 0.0
    %605 = vmatprep.subr.mxu0 0.0
    %606 = vmatpush1.msra.mxu0 0.0
    %607 = vmatprep.subr.mxu0 0.0
    %608 = vmatpush1.msra.mxu0 0.0
    %609 = vmatprep.subr.mxu0 0.0
    %610 = vmatpush1.msra.mxu0 0.0
    %611 = vmatprep.subr.mxu0 0.0
    %612 = vmatpush1.msra.mxu0 0.0
    %613 = vmatprep.subr.mxu0 0.0
    %614 = vmatpush1.msra.mxu0 0.0
    %615 = vmatprep.subr.mxu0 0.0
    %616 = vmatpush1.msra.mxu0 0.0
    %617 = vmatprep.subr.mxu0 0.0
    %618 = vmatpush1.msra.mxu0 0.0
    %619 = vmatprep.subr.mxu0 0.0
    %620 = vmatpush1.msra.mxu0 0.0
    %621 = vmatprep.subr.mxu0 0.0
    %622 = vmatpush1.msra.mxu0 0.0
    %623 = vmatprep.subr.mxu0 0.0
    %624 = vmatpush1.msra.mxu0 0.0
    %625 = vmatprep.subr.mxu0 0.0
    %626 = vmatpush1.msra.mxu0 0.0
    %627 = vmatprep.subr.mxu0 0.0
    %628 = vmatpush1.msra.mxu0 0.0
    %629 = vmatprep.subr.mxu0 0.0
    %630 = vmatpush1.msra.mxu0 0.0
    %631 = vmatprep.subr.mxu0 0.0
    %632 = vmatpush1.msra.mxu0 0.0
    %633 = vmatprep.subr.mxu0 0.0
    %634 = vmatpush1.msra.mxu0 0.0
    %635 = vmatprep.subr.mxu0 0.0
    %636 = vmatpush1.msra.mxu0 0.0
    %637 = vmatprep.subr.mxu0 0.0
    %638 = vmatpush1.msra.mxu0 0.0
    %639 = vmatprep.subr.mxu0 0.0
    %640 = vmatpush1.msra.mxu0 0.0
    %641 = vmatprep.subr.mxu0 0.0
    %642 = vmatpush1.msra.mxu0 0.0
    %643 = vmatprep.mubr.f32.mxu0 0.0
    %644 = vmatmul.mubr.f32.gmra.mrb[0].mxu0 %v568
    %v645 = vpop.f32.mrb[0].mxu0
    %v646 = vadd.f32 0.0, %v645
    %v647 = vpop.f32.mrb[0].mxu0
    %648 = vmatprep.mubr.f32.mxu0 0.0
    %649 = vmatmul.mubr.f32.gmra.mrb[0].mxu0 %v571
    %v650 = vpop.f32.mrb[0].mxu0
    %v651 = vadd.f32 0.0, %v650
    %v652 = vpop.f32.mrb[0].mxu0
    %653 = vmatprep.mubr.f32.mxu0 0.0
    %654 = vmatmul.mubr.f32.gmra.mrb[0].mxu0 %v574
    %v655 = vpop.f32.mrb[0].mxu0
    %v656 = vadd.f32 0.0, %v655
    %v657 = vpop.f32.mrb[0].mxu0
    %658 = vmatprep.mubr.f32.mxu0 0.0
    %659 = vmatmul.mubr.f32.gmra.mrb[0].mxu0 %v577
    %v660 = vpop.f32.mrb[0].mxu0
    %v661 = vadd.f32 0.0, %v660
    %v662 = vpop.f32.mrb[0].mxu0
    %663 = vdwg.mxu0
    %s664 = scalar_lea.vmem [#allocation4], 128
    %v665 = vld [vmem:[%s664] sm:$0xff]
    %v666 = vld [vmem:[%s664 + $0x8] sm:$0xff]
    %v667 = vld [vmem:[%s664 + $0x10] sm:$0xff]
    %v668 = vld [vmem:[%s664 + $0x18] sm:$0xff]
    %v670 = vsel %vm207, %v646, 0
    %v673 = vsel %vm207, %v651, 0
    %675 = vmatprep.subr.mxu0 0.0
    %676 = vmatpush1.msra.mxu0 %v665
    %677 = vmatprep.subr.mxu0 0.0
    %678 = vmatpush1.msra.mxu0 %v666
    %679 = vmatprep.subr.mxu0 0.0
    %680 = vmatpush1.msra.mxu0 %v667
    %681 = vmatprep.subr.mxu0 0.0
    %682 = vmatpush1.msra.mxu0 %v668
    %683 = vmatprep.subr.mxu0 0.0
    %684 = vmatpush1.msra.mxu0 0.0
    %685 = vmatprep.subr.mxu0 0.0
    %686 = vmatpush1.msra.mxu0 0.0
    %687 = vmatprep.subr.mxu0 0.0
    %688 = vmatpush1.msra.mxu0 0.0
    %689 = vmatprep.subr.mxu0 0.0
    %690 = vmatpush1.msra.mxu0 0.0
    %691 = vmatprep.subr.mxu0 0.0
    %692 = vmatpush1.msra.mxu0 0.0
    %693 = vmatprep.subr.mxu0 0.0
    %694 = vmatpush1.msra.mxu0 0.0
    %695 = vmatprep.subr.mxu0 0.0
    %696 = vmatpush1.msra.mxu0 0.0
    %697 = vmatprep.subr.mxu0 0.0
    %698 = vmatpush1.msra.mxu0 0.0
    %699 = vmatprep.subr.mxu0 0.0
    %700 = vmatpush1.msra.mxu0 0.0
    %701 = vmatprep.subr.mxu0 0.0
    %702 = vmatpush1.msra.mxu0 0.0
    %703 = vmatprep.subr.mxu0 0.0
    %704 = vmatpush1.msra.mxu0 0.0
    %705 = vmatprep.subr.mxu0 0.0
    %706 = vmatpush1.msra.mxu0 0.0
    %707 = vmatprep.subr.mxu0 0.0
    %708 = vmatpush1.msra.mxu0 0.0
    %709 = vmatprep.subr.mxu0 0.0
    %710 = vmatpush1.msra.mxu0 0.0
    %711 = vmatprep.subr.mxu0 0.0
    %712 = vmatpush1.msra.mxu0 0.0
    %713 = vmatprep.subr.mxu0 0.0
    %714 = vmatpush1.msra.mxu0 0.0
    %715 = vmatprep.subr.mxu0 0.0
    %716 = vmatpush1.msra.mxu0 0.0
    %717 = vmatprep.subr.mxu0 0.0
    %718 = vmatpush1.msra.mxu0 0.0
    %719 = vmatprep.subr.mxu0 0.0
    %720 = vmatpush1.msra.mxu0 0.0
    %721 = vmatprep.subr.mxu0 0.0
    %722 = vmatpush1.msra.mxu0 0.0
    %723 = vmatprep.subr.mxu0 0.0
    %724 = vmatpush1.msra.mxu0 0.0
    %725 = vmatprep.subr.mxu0 0.0
    %726 = vmatpush1.msra.mxu0 0.0
    %727 = vmatprep.subr.mxu0 0.0
    %728 = vmatpush1.msra.mxu0 0.0
    %729 = vmatprep.subr.mxu0 0.0
    %730 = vmatpush1.msra.mxu0 0.0
    %731 = vmatprep.subr.mxu0 0.0
    %732 = vmatpush1.msra.mxu0 0.0
    %733 = vmatprep.subr.mxu0 0.0
    %734 = vmatpush1.msra.mxu0 0.0
    %735 = vmatprep.subr.mxu0 0.0
    %736 = vmatpush1.msra.mxu0 0.0
    %737 = vmatprep.subr.mxu0 0.0
    %738 = vmatpush1.msra.mxu0 0.0
    %739 = vmatprep.mubr.f32.mxu0 0.0
    %740 = vmatmul.mubr.f32.gmra.mrb[0].mxu0 %v670
    %v741 = vpop.f32.mrb[0].mxu0
    %v742 = vadd.f32 0.0, %v741
    %v743 = vpop.f32.mrb[0].mxu0
    %744 = vmatprep.mubr.f32.mxu0 0.0
    %745 = vmatmul.mubr.f32.gmra.mrb[0].mxu0 %v673
    %v746 = vpop.f32.mrb[0].mxu0
    %v747 = vadd.f32 0.0, %v746
    %v748 = vpop.f32.mrb[0].mxu0
    %749 = vdwg.mxu0
    %v750 = vmax.f32 %v742, 0.0
    %v751 = vmax.f32 %v747, 0.0
    %s752 = scalar_lea.vmem [#allocation4], 160
    %v753 = vld [vmem:[%s752] sm:$0xff]
    %v754 = vld [vmem:[%s752 + $0x8] sm:$0xff]
    %v755 = vld [vmem:[%s752 + $0x10] sm:$0xff]
    %v756 = vld [vmem:[%s752 + $0x18] sm:$0xff]
    %v758 = vsel %vm207, %v656, 0
    %v761 = vsel %vm207, %v661, 0
    %763 = vmatprep.subr.mxu0 0.0
    %764 = vmatpush1.msra.mxu0 %v753
    %765 = vmatprep.subr.mxu0 0.0
    %766 = vmatpush1.msra.mxu0 %v754
    %767 = vmatprep.subr.mxu0 0.0
    %768 = vmatpush1.msra.mxu0 %v755
    %769 = vmatprep.subr.mxu0 0.0
    %770 = vmatpush1.msra.mxu0 %v756
    %771 = vmatprep.subr.mxu0 0.0
    %772 = vmatpush1.msra.mxu0 0.0
    %773 = vmatprep.subr.mxu0 0.0
    %774 = vmatpush1.msra.mxu0 0.0
    %775 = vmatprep.subr.mxu0 0.0
    %776 = vmatpush1.msra.mxu0 0.0
    %777 = vmatprep.subr.mxu0 0.0
    %778 = vmatpush1.msra.mxu0 0.0
    %779 = vmatprep.subr.mxu0 0.0
    %780 = vmatpush1.msra.mxu0 0.0
    %781 = vmatprep.subr.mxu0 0.0
    %782 = vmatpush1.msra.mxu0 0.0
    %783 = vmatprep.subr.mxu0 0.0
    %784 = vmatpush1.msra.mxu0 0.0
    %785 = vmatprep.subr.mxu0 0.0
    %786 = vmatpush1.msra.mxu0 0.0
    %787 = vmatprep.subr.mxu0 0.0
    %788 = vmatpush1.msra.mxu0 0.0
    %789 = vmatprep.subr.mxu0 0.0
    %790 = vmatpush1.msra.mxu0 0.0
    %791 = vmatprep.subr.mxu0 0.0
    %792 = vmatpush1.msra.mxu0 0.0
    %793 = vmatprep.subr.mxu0 0.0
    %794 = vmatpush1.msra.mxu0 0.0
    %795 = vmatprep.subr.mxu0 0.0
    %796 = vmatpush1.msra.mxu0 0.0
    %797 = vmatprep.subr.mxu0 0.0
    %798 = vmatpush1.msra.mxu0 0.0
    %799 = vmatprep.subr.mxu0 0.0
    %800 = vmatpush1.msra.mxu0 0.0
    %801 = vmatprep.subr.mxu0 0.0
    %802 = vmatpush1.msra.mxu0 0.0
    %803 = vmatprep.subr.mxu0 0.0
    %804 = vmatpush1.msra.mxu0 0.0
    %805 = vmatprep.subr.mxu0 0.0
    %806 = vmatpush1.msra.mxu0 0.0
    %807 = vmatprep.subr.mxu0 0.0
    %808 = vmatpush1.msra.mxu0 0.0
    %809 = vmatprep.subr.mxu0 0.0
    %810 = vmatpush1.msra.mxu0 0.0
    %811 = vmatprep.subr.mxu0 0.0
    %812 = vmatpush1.msra.mxu0 0.0
    %813 = vmatprep.subr.mxu0 0.0
    %814 = vmatpush1.msra.mxu0 0.0
    %815 = vmatprep.subr.mxu0 0.0
    %816 = vmatpush1.msra.mxu0 0.0
    %817 = vmatprep.subr.mxu0 0.0
    %818 = vmatpush1.msra.mxu0 0.0
    %819 = vmatprep.subr.mxu0 0.0
    %820 = vmatpush1.msra.mxu0 0.0
    %821 = vmatprep.subr.mxu0 0.0
    %822 = vmatpush1.msra.mxu0 0.0
    %823 = vmatprep.subr.mxu0 0.0
    %824 = vmatpush1.msra.mxu0 0.0
    %825 = vmatprep.subr.mxu0 0.0
    %826 = vmatpush1.msra.mxu0 0.0
    %827 = vmatprep.mubr.f32.mxu0 0.0
    %828 = vmatmul.mubr.f32.gmra.mrb[0].mxu0 %v758
    %v829 = vpop.f32.mrb[0].mxu0
    %v830 = vadd.f32 0.0, %v829
    %v831 = vpop.f32.mrb[0].mxu0
    %832 = vmatprep.mubr.f32.mxu0 0.0
    %833 = vmatmul.mubr.f32.gmra.mrb[0].mxu0 %v761
    %v834 = vpop.f32.mrb[0].mxu0
    %v835 = vadd.f32 0.0, %v834
    %v836 = vpop.f32.mrb[0].mxu0
    %837 = vdwg.mxu0
    %v838 = vmax.f32 %v830, 0.0
    %v839 = vmax.f32 %v835, 0.0
    %v840 = vadd.f32 %v750, %v838
    %v841 = vadd.f32 %v751, %v839
    %v842 = vmul.f32 %v840, 0.5
    %v843 = vmul.f32 %v841, 0.5
    %v844 = vld [vmem:[#allocation6] sm:$0xff]
    %v845 = vld [vmem:[#allocation6 + $0x8] sm:$0xff]
    %v846 = vld [vmem:[#allocation6 + $0x10] sm:$0xff]
    %v847 = vld [vmem:[#allocation6 + $0x18] sm:$0xff]
    %852 = vrot.lane.b32.xlu0 %v844, 112
    %v853 = vpop.permute.xlu0 %852
    %854 = vrot.lane.b32.xlu0 %v845, 112
    %v855 = vpop.permute.xlu0 %854
    %856 = vrot.lane.b32.xlu0 %v846, 112
    %v857 = vpop.permute.xlu0 %856
    %858 = vrot.lane.b32.xlu0 %v847, 112
    %v859 = vpop.permute.xlu0 %858
    %v860 = vsel %vm73, %v853, 0
    %v862 = vsel %vm73, %v855, 0
    %v864 = vsel %vm73, %v857, 0
    %v866 = vsel %vm73, %v859, 0
    %868 = vmatprep.subr.mxu0 0.0
    %869 = vmatpush1.msra.mxu0 %v842
    %870 = vmatprep.subr.mxu0 0.0
    %871 = vmatpush1.msra.mxu0 %v843
    %872 = vmatprep.subr.mxu0 0.0
    %873 = vmatpush1.msra.mxu0 0.0
    %874 = vmatprep.subr.mxu0 0.0
    %875 = vmatpush1.msra.mxu0 0.0
    %876 = vmatprep.subr.mxu0 0.0
    %877 = vmatpush1.msra.mxu0 0.0
    %878 = vmatprep.subr.mxu0 0.0
    %879 = vmatpush1.msra.mxu0 0.0
    %880 = vmatprep.subr.mxu0 0.0
    %881 = vmatpush1.msra.mxu0 0.0
    %882 = vmatprep.subr.mxu0 0.0
    %883 = vmatpush1.msra.mxu0 0.0
    %884 = vmatprep.subr.mxu0 0.0
    %885 = vmatpush1.msra.mxu0 0.0
    %886 = vmatprep.subr.mxu0 0.0
    %887 = vmatpush1.msra.mxu0 0.0
    %888 = vmatprep.subr.mxu0 0.0
    %889 = vmatpush1.msra.mxu0 0.0
    %890 = vmatprep.subr.mxu0 0.0
    %891 = vmatpush1.msra.mxu0 0.0
    %892 = vmatprep.subr.mxu0 0.0
    %893 = vmatpush1.msra.mxu0 0.0
    %894 = vmatprep.subr.mxu0 0.0
    %895 = vmatpush1.msra.mxu0 0.0
    %896 = vmatprep.subr.mxu0 0.0
    %897 = vmatpush1.msra.mxu0 0.0
    %898 = vmatprep.subr.mxu0 0.0
    %899 = vmatpush1.msra.mxu0 0.0
    %900 = vmatprep.subr.mxu0 0.0
    %901 = vmatpush1.msra.mxu0 0.0
    %902 = vmatprep.subr.mxu0 0.0
    %903 = vmatpush1.msra.mxu0 0.0
    %904 = vmatprep.subr.mxu0 0.0
    %905 = vmatpush1.msra.mxu0 0.0
    %906 = vmatprep.subr.mxu0 0.0
    %907 = vmatpush1.msra.mxu0 0.0
    %908 = vmatprep.subr.mxu0 0.0
    %909 = vmatpush1.msra.mxu0 0.0
    %910 = vmatprep.subr.mxu0 0.0
    %911 = vmatpush1.msra.mxu0 0.0
    %912 = vmatprep.subr.mxu0 0.0
    %913 = vmatpush1.msra.mxu0 0.0
    %914 = vmatprep.subr.mxu0 0.0
    %915 = vmatpush1.msra.mxu0 0.0
    %916 = vmatprep.subr.mxu0 0.0
    %917 = vmatpush1.msra.mxu0 0.0
    %918 = vmatprep.subr.mxu0 0.0
    %919 = vmatpush1.msra.mxu0 0.0
    %920 = vmatprep.subr.mxu0 0.0
    %921 = vmatpush1.msra.mxu0 0.0
    %922 = vmatprep.subr.mxu0 0.0
    %923 = vmatpush1.msra.mxu0 0.0
    %924 = vmatprep.subr.mxu0 0.0
    %925 = vmatpush1.msra.mxu0 0.0
    %926 = vmatprep.subr.mxu0 0.0
    %927 = vmatpush1.msra.mxu0 0.0
    %928 = vmatprep.subr.mxu0 0.0
    %929 = vmatpush1.msra.mxu0 0.0
    %930 = vmatprep.subr.mxu0 0.0
    %931 = vmatpush1.msra.mxu0 0.0
    %932 = vmatprep.mubr.f32.mxu0 0.0
    %933 = vmatmul.mubr.f32.gmra.mrb[0].mxu0 %v860
    %v934 = vpop.f32.mrb[0].mxu0
    %v935 = vadd.f32 0.0, %v934
    %v936 = vpop.f32.mrb[0].mxu0
    %937 = vmatprep.mubr.f32.mxu0 0.0
    %938 = vmatmul.mubr.f32.gmra.mrb[0].mxu0 %v862
    %v939 = vpop.f32.mrb[0].mxu0
    %v940 = vadd.f32 0.0, %v939
    %v941 = vpop.f32.mrb[0].mxu0
    %942 = vmatprep.mubr.f32.mxu0 0.0
    %943 = vmatmul.mubr.f32.gmra.mrb[0].mxu0 %v864
    %v944 = vpop.f32.mrb[0].mxu0
    %v945 = vadd.f32 0.0, %v944
    %v946 = vpop.f32.mrb[0].mxu0
    %947 = vmatprep.mubr.f32.mxu0 0.0
    %948 = vmatmul.mubr.f32.gmra.mrb[0].mxu0 %v866
    %v949 = vpop.f32.mrb[0].mxu0
    %v950 = vadd.f32 0.0, %v949
    %v951 = vpop.f32.mrb[0].mxu0
    %952 = vdwg.mxu0
    %v953 = vsel %vm73, %v844, 0
    %v955 = vsel %vm73, %v845, 0
    %v957 = vsel %vm73, %v846, 0
    %v959 = vsel %vm73, %v847, 0
    %961 = vmatprep.subr.mxu0 0.0
    %962 = vmatpush1.msra.mxu0 %v561
    %963 = vmatprep.subr.mxu0 0.0
    %964 = vmatpush1.msra.mxu0 %v562
    %965 = vmatprep.subr.mxu0 0.0
    %966 = vmatpush1.msra.mxu0 0.0
    %967 = vmatprep.subr.mxu0 0.0
    %968 = vmatpush1.msra.mxu0 0.0
    %969 = vmatprep.subr.mxu0 0.0
    %970 = vmatpush1.msra.mxu0 0.0
    %971 = vmatprep.subr.mxu0 0.0
    %972 = vmatpush1.msra.mxu0 0.0
    %973 = vmatprep.subr.mxu0 0.0
    %974 = vmatpush1.msra.mxu0 0.0
    %975 = vmatprep.subr.mxu0 0.0
    %976 = vmatpush1.msra.mxu0 0.0
    %977 = vmatprep.subr.mxu0 0.0
    %978 = vmatpush1.msra.mxu0 0.0
    %979 = vmatprep.subr.mxu0 0.0
    %980 = vmatpush1.msra.mxu0 0.0
    %981 = vmatprep.subr.mxu0 0.0
    %982 = vmatpush1.msra.mxu0 0.0
    %983 = vmatprep.subr.mxu0 0.0
    %984 = vmatpush1.msra.mxu0 0.0
    %985 = vmatprep.subr.mxu0 0.0
    %986 = vmatpush1.msra.mxu0 0.0
    %987 = vmatprep.subr.mxu0 0.0
    %988 = vmatpush1.msra.mxu0 0.0
    %989 = vmatprep.subr.mxu0 0.0
    %990 = vmatpush1.msra.mxu0 0.0
    %991 = vmatprep.subr.mxu0 0.0
    %992 = vmatpush1.msra.mxu0 0.0
    %993 = vmatprep.subr.mxu0 0.0
    %994 = vmatpush1.msra.mxu0 0.0
    %995 = vmatprep.subr.mxu0 0.0
    %996 = vmatpush1.msra.mxu0 0.0
    %997 = vmatprep.subr.mxu0 0.0
    %998 = vmatpush1.msra.mxu0 0.0
    %999 = vmatprep.subr.mxu0 0.0
    %1000 = vmatpush1.msra.mxu0 0.0
    %1001 = vmatprep.subr.mxu0 0.0
    %1002 = vmatpush1.msra.mxu0 0.0
    %1003 = vmatprep.subr.mxu0 0.0
    %1004 = vmatpush1.msra.mxu0 0.0
    %1005 = vmatprep.subr.mxu0 0.0
    %1006 = vmatpush1.msra.mxu0 0.0
    %1007 = vmatprep.subr.mxu0 0.0
    %1008 = vmatpush1.msra.mxu0 0.0
    %1009 = vmatprep.subr.mxu0 0.0
    %1010 = vmatpush1.msra.mxu0 0.0
    %1011 = vmatprep.subr.mxu0 0.0
    %1012 = vmatpush1.msra.mxu0 0.0
    %1013 = vmatprep.subr.mxu0 0.0
    %1014 = vmatpush1.msra.mxu0 0.0
    %1015 = vmatprep.subr.mxu0 0.0
    %1016 = vmatpush1.msra.mxu0 0.0
    %1017 = vmatprep.subr.mxu0 0.0
    %1018 = vmatpush1.msra.mxu0 0.0
    %1019 = vmatprep.subr.mxu0 0.0
    %1020 = vmatpush1.msra.mxu0 0.0
    %1021 = vmatprep.subr.mxu0 0.0
    %1022 = vmatpush1.msra.mxu0 0.0
    %1023 = vmatprep.subr.mxu0 0.0
    %1024 = vmatpush1.msra.mxu0 0.0
    %1025 = vmatprep.mubr.f32.mxu0 0.0
    %1026 = vmatmul.mubr.f32.gmra.mrb[0].mxu0 %v953
    %v1027 = vpop.f32.mrb[0].mxu0
    %v1028 = vadd.f32 %v935, %v1027
    %v1029 = vpop.f32.mrb[0].mxu0
    %1030 = vmatprep.mubr.f32.mxu0 0.0
    %1031 = vmatmul.mubr.f32.gmra.mrb[0].mxu0 %v955
    %v1032 = vpop.f32.mrb[0].mxu0
    %v1033 = vadd.f32 %v940, %v1032
    %v1034 = vpop.f32.mrb[0].mxu0
    %1035 = vmatprep.mubr.f32.mxu0 0.0
    %1036 = vmatmul.mubr.f32.gmra.mrb[0].mxu0 %v957
    %v1037 = vpop.f32.mrb[0].mxu0
    %v1038 = vadd.f32 %v945, %v1037
    %v1039 = vpop.f32.mrb[0].mxu0
    %1040 = vmatprep.mubr.f32.mxu0 0.0
    %1041 = vmatmul.mubr.f32.gmra.mrb[0].mxu0 %v959
    %v1042 = vpop.f32.mrb[0].mxu0
    %v1043 = vadd.f32 %v950, %v1042
    %v1044 = vpop.f32.mrb[0].mxu0
    %1045 = vdwg.mxu0
    %s1046 = scalar_lea.vmem [#allocation4], 192
    %v1047 = vld [vmem:[%s1046] sm:$0xff]
    %v1048 = vld [vmem:[%s1046 + $0x8] sm:$0xff]
    %v1049 = vld [vmem:[%s1046 + $0x10] sm:$0xff]
    %v1050 = vld [vmem:[%s1046 + $0x18] sm:$0xff]
    %v1052 = vsel %vm207, %v1028, 0
    %v1055 = vsel %vm207, %v1033, 0
    %v1058 = vsel %vm207, %v1038, 0
    %v1061 = vsel %vm207, %v1043, 0
    %1063 = vmatprep.subr.mxu0 0.0
    %1064 = vmatpush1.msra.mxu0 %v1047
    %1065 = vmatprep.subr.mxu0 0.0
    %1066 = vmatpush1.msra.mxu0 %v1048
    %1067 = vmatprep.subr.mxu0 0.0
    %1068 = vmatpush1.msra.mxu0 %v1049
    %1069 = vmatprep.subr.mxu0 0.0
    %1070 = vmatpush1.msra.mxu0 %v1050
    %1071 = vmatprep.subr.mxu0 0.0
    %1072 = vmatpush1.msra.mxu0 0.0
    %1073 = vmatprep.subr.mxu0 0.0
    %1074 = vmatpush1.msra.mxu0 0.0
    %1075 = vmatprep.subr.mxu0 0.0
    %1076 = vmatpush1.msra.mxu0 0.0
    %1077 = vmatprep.subr.mxu0 0.0
    %1078 = vmatpush1.msra.mxu0 0.0
    %1079 = vmatprep.subr.mxu0 0.0
    %1080 = vmatpush1.msra.mxu0 0.0
    %1081 = vmatprep.subr.mxu0 0.0
    %1082 = vmatpush1.msra.mxu0 0.0
    %1083 = vmatprep.subr.mxu0 0.0
    %1084 = vmatpush1.msra.mxu0 0.0
    %1085 = vmatprep.subr.mxu0 0.0
    %1086 = vmatpush1.msra.mxu0 0.0
    %1087 = vmatprep.subr.mxu0 0.0
    %1088 = vmatpush1.msra.mxu0 0.0
    %1089 = vmatprep.subr.mxu0 0.0
    %1090 = vmatpush1.msra.mxu0 0.0
    %1091 = vmatprep.subr.mxu0 0.0
    %1092 = vmatpush1.msra.mxu0 0.0
    %1093 = vmatprep.subr.mxu0 0.0
    %1094 = vmatpush1.msra.mxu0 0.0
    %1095 = vmatprep.subr.mxu0 0.0
    %1096 = vmatpush1.msra.mxu0 0.0
    %1097 = vmatprep.subr.mxu0 0.0
    %1098 = vmatpush1.msra.mxu0 0.0
    %1099 = vmatprep.subr.mxu0 0.0
    %1100 = vmatpush1.msra.mxu0 0.0
    %1101 = vmatprep.subr.mxu0 0.0
    %1102 = vmatpush1.msra.mxu0 0.0
    %1103 = vmatprep.subr.mxu0 0.0
    %1104 = vmatpush1.msra.mxu0 0.0
    %1105 = vmatprep.subr.mxu0 0.0
    %1106 = vmatpush1.msra.mxu0 0.0
    %1107 = vmatprep.subr.mxu0 0.0
    %1108 = vmatpush1.msra.mxu0 0.0
    %1109 = vmatprep.subr.mxu0 0.0
    %1110 = vmatpush1.msra.mxu0 0.0
    %1111 = vmatprep.subr.mxu0 0.0
    %1112 = vmatpush1.msra.mxu0 0.0
    %1113 = vmatprep.subr.mxu0 0.0
    %1114 = vmatpush1.msra.mxu0 0.0
    %1115 = vmatprep.subr.mxu0 0.0
    %1116 = vmatpush1.msra.mxu0 0.0
    %1117 = vmatprep.subr.mxu0 0.0
    %1118 = vmatpush1.msra.mxu0 0.0
    %1119 = vmatprep.subr.mxu0 0.0
    %1120 = vmatpush1.msra.mxu0 0.0
    %1121 = vmatprep.subr.mxu0 0.0
    %1122 = vmatpush1.msra.mxu0 0.0
    %1123 = vmatprep.subr.mxu0 0.0
    %1124 = vmatpush1.msra.mxu0 0.0
    %1125 = vmatprep.subr.mxu0 0.0
    %1126 = vmatpush1.msra.mxu0 0.0
    %1127 = vmatprep.mubr.f32.mxu0 0.0
    %1128 = vmatmul.mubr.f32.gmra.mrb[0].mxu0 %v1052
    %v1129 = vpop.f32.mrb[0].mxu0
    %v1130 = vadd.f32 0.0, %v1129
    %v1131 = vpop.f32.mrb[0].mxu0
    %1132 = vmatprep.mubr.f32.mxu0 0.0
    %1133 = vmatmul.mubr.f32.gmra.mrb[0].mxu0 %v1055
    %v1134 = vpop.f32.mrb[0].mxu0
    %v1135 = vadd.f32 0.0, %v1134
    %v1136 = vpop.f32.mrb[0].mxu0
    %1137 = vmatprep.mubr.f32.mxu0 0.0
    %1138 = vmatmul.mubr.f32.gmra.mrb[0].mxu0 %v1058
    %v1139 = vpop.f32.mrb[0].mxu0
    %v1140 = vadd.f32 0.0, %v1139
    %v1141 = vpop.f32.mrb[0].mxu0
    %1142 = vmatprep.mubr.f32.mxu0 0.0
    %1143 = vmatmul.mubr.f32.gmra.mrb[0].mxu0 %v1061
    %v1144 = vpop.f32.mrb[0].mxu0
    %v1145 = vadd.f32 0.0, %v1144
    %v1146 = vpop.f32.mrb[0].mxu0
    %1147 = vdwg.mxu0
    %v1148 = vmax.f32 %v1130, 0.0
    %v1149 = vmax.f32 %v1135, 0.0
    %v1150 = vmax.f32 %v1140, 0.0
    %v1151 = vmax.f32 %v1145, 0.0
    %1152 = vst.msk [vmem:[%s5] sm:$0xff] %vm207, %v1148
    %1153 = vst.msk [vmem:[%s5 + $0x8] sm:$0xff] %vm207, %v1149
    %1154 = vst.msk [vmem:[%s5 + $0x10] sm:$0xff] %vm207, %v1150
    %1155 = vst.msk [vmem:[%s5 + $0x18] sm:$0xff] %vm207, %v1151
    // Predicated region
    $region34: #{a_call__.1} parent=1 // pred_check
      _
    $region35: #{a_call__.1} parent=1 // pred_check_branch
      %1157 = sbr.rel (0) target = $region37
    $region36: #{a_call__.1} parent=1 // pred_region
      _
    $region37: #{a_call__.1} parent=1 // pred_fallthru
      _
    // Predicated region
    $region38: #{a_call__.1} parent=1 // pred_check
      _
    $region39: #{a_call__.1} parent=1 // pred_check_branch
      %1159 = sbr.rel (0) target = $region41
    $region40: #{a_call__.1} parent=1 // pred_region
      _
    $region41: #{a_call__.1} parent=1 // pred_fallthru
      _
    %1160 = vsyncpa [#allocation3], 1
    %1161 = vsyncpa [#allocation5], 1

</llo_original>
